<compile_context>
chip_gen: v7x
topology: tpu7x:2x2x1
jax: 0.10.0
libtpu: 0.0.40
codegen_flags: <defaults>
</compile_context>

<pallas_src>
import functools

import numpy as np
import jax
import jax.numpy as jnp
from jax import lax
from jax.experimental import pallas as pl
from jax.experimental.pallas import tpu as pltpu

# TODO(synk): LayerNorm / TempSoftmax sources were not given in the reference; a standard
# eps=1e-6 LayerNorm and softmax(x / temp, dim=-1) are assumed.  Dropout(p=0) is a no-op.
EPS = 1e-6
_NEG_BIG = -1e30  # finite "-inf": masked scores underflow to exactly 0 after exp, no NaN rows


def _transformer_layer_kernel(q_ref, kv_ref, mask_ref,
                              ws_ref, w2_ref, bp_ref, gamma_ref, beta_ref,
                              out_ref, attn_ref,
                              *, inv_temp: float):
    bt, tq, d = q_ref.shape
    lp = kv_ref.shape[1]
    n_head = ws_ref.shape[0]
    mm_dtype = kv_ref.dtype                       # matmul operand dtype (f32 or bf16)

    q2 = q_ref[...].reshape(bt * tq, d)           # leading-dim reshape only: free
    kv = kv_ref[...]                              # (bt, lp, d)

    # Additive mask built once and shared by every head (single VPU multiply,
    # no per-head select / repeated int8 unpack).  0 = attendable, -1e30 = masked.
    mask_add = mask_ref[...].astype(jnp.float32) * _NEG_BIG          # (bt, tq, lp)

    attn_sum = jnp.zeros((bt, tq, lp), jnp.float32)
    proj = jnp.zeros((bt * tq, d), jnp.float32)

    # Statically-unrolled head loop.  All per-head tensors are full tiles:
    #   - weights are indexed with a leading (head) index -> contiguous (d, d) slabs,
    #   - the value path is folded into the projection (w2 = w_v @ w_prj per head),
    #     so there is no value tensor, no lane slicing and no concat.
    for h in range(n_head):
        s_h = jnp.dot(q2, ws_ref[h], preferred_element_type=jnp.float32)
        if inv_temp != 1.0:
            # temperature applied to the small (rows, D) projection, not the (rows, Lp) scores
            s_h = s_h * inv_temp
        s_h = s_h.reshape(bt, tq, d).astype(mm_dtype)

        # Contract the feature dim of both operands directly: no kv transpose in VMEM.
        scores = jnp.einsum('bqd,bkd->bqk', s_h, kv,
                            preferred_element_type=jnp.float32) + mask_add
        m = jnp.max(scores, axis=-1, keepdims=True)
        e = jnp.exp(scores - m)
        a = e / jnp.sum(e, axis=-1, keepdims=True)     # exact softmax (matches reference)
        attn_sum = attn_sum + a

        ctx = jnp.einsum('bqk,bkd->bqd', a.astype(mm_dtype), kv,
                         preferred_element_type=jnp.float32)          # (bt, tq, d)
        proj = proj + jnp.dot(ctx.reshape(bt * tq, d).astype(mm_dtype), w2_ref[h],
                              preferred_element_type=jnp.float32)

    # Linear bias + ReLU, then LayerNorm over the feature dim (rsqrt -> EUP slot).
    proj = jnp.maximum(proj + bp_ref[...], 0.0)
    mean = jnp.mean(proj, axis=-1, keepdims=True)
    var = jnp.mean(jnp.square(proj - mean), axis=-1, keepdims=True)
    y = (proj - mean) * lax.rsqrt(var + EPS) * gamma_ref[...] + beta_ref[...]

    out_ref[...] = y.reshape(bt, tq, d).astype(out_ref.dtype)
    attn_ref[...] = attn_sum.astype(attn_ref.dtype)


def _round_up(x, m):
    return ((x + m - 1) // m) * m


def _block_vmem_bytes(bt, tq, lp, d, n_head, mm_bytes):
    """Rough per-grid-step VMEM footprint: pipelined I/O blocks + weights + live temps."""
    io = 2 * bt * (tq * d * mm_bytes + lp * d * mm_bytes + tq * lp          # q, kv, int8 mask
                   + tq * d * 4 + tq * lp * 4)                              # out, attn (f32)
    weights = 2 * (2 * n_head * d * d * mm_bytes + 3 * d * 4)
    temps = 4 * bt * (5 * tq * lp + 4 * tq * d)                             # scores/e/a/mask/attn + s/ctx/proj
    return io + weights + temps


def _choose_b_tile(B, tq, lp, d, n_head, mm_bytes, budget_bytes):
    # Cap so the batch grid has >= 2 steps: lets v7x's second TensorCore pick up
    # work via the "parallel" batch axis (one extra ~0.35us step elsewhere is noise).
    bt_cap = B if B < 2 else max(1, B // 2)
    best = 1
    for bt in range(1, bt_cap + 1):
        if B % bt:
            continue
        if bt * tq <= 4096 and _block_vmem_bytes(bt, tq, lp, d, n_head, mm_bytes) <= budget_bytes:
            best = bt
    return best


def transformer_layer(node_enc, neigh_enc, attn_mask,
                      w_s, w_v, w_prj, b_prj, gamma, beta,
                      *, temperature: float = 1.0,
                      matmul_dtype=jnp.float32,
                      b_tile=None):
    B, N, T, D = neigh_enc.shape
    Tq = node_enc.shape[1]
    L = N * T
    n_head = w_s.shape[0]
    mm_dtype = np.dtype(matmul_dtype)
    mm_bytes = mm_dtype.itemsize

    # torch.cat(torch.split(neigh_enc, 1, dim=1), dim=2)[:, 0]  ==  reshape(B, N*T, D)
    kv = neigh_enc.reshape(B, L, D)
    mask_i8 = attn_mask.astype(jnp.int8)               # int8 mask: 4x less DMA than f32

    # Lane-dense score/attention axis.  Only pad when L is not already a multiple of
    # 128 (no wrapper-side HBM copy in the aligned case).
    Lp = L if L % 128 == 0 else _round_up(L, 128)
    pad = Lp - L
    if pad:
        kv = jnp.pad(kv, ((0, 0), (0, pad), (0, 0)))
        mask_i8 = jnp.pad(mask_i8, ((0, 0), (0, 0), (0, pad)), constant_values=1)
    # TODO(synk): for very large L, an L-tiled grid axis with online-softmax scratch would
    # remove the VMEM residency requirement on kv/mask (matters on v7x's 64 MiB VMEM).

    # Fold W_v[h] @ W_prj[h] into one (D, D) weight per head: the value path collapses
    # into the projection, removing the (L, n_head*D) value tensor and the concat.
    hi = lax.Precision.HIGHEST
    w_prj_heads = w_prj.reshape(n_head, D, D)
    w2 = jnp.einsum('hij,hjk->hik', w_v, w_prj_heads, precision=hi).astype(mm_dtype)
    ws = w_s.astype(mm_dtype)

    q_in = node_enc.astype(mm_dtype)
    kv_in = kv.astype(mm_dtype)

    # Generation-aware VMEM sizing: 128 MiB on v5e/v6e, 64 MiB on v7x.
    try:
        vmem_cap = int(pltpu.get_tpu_info().vmem_capacity_bytes)
    except Exception:
        vmem_cap = 64 * 1024 * 1024
    budget = int(0.45 * vmem_cap)

    bt = b_tile if b_tile is not None else _choose_b_tile(B, Tq, Lp, D, n_head, mm_bytes, budget)
    assert B % bt == 0, "b_tile must divide the batch size"
    block_bytes = _block_vmem_bytes(bt, Tq, Lp, D, n_head, mm_bytes)
    vmem_limit = int(min(int(0.75 * vmem_cap), max(16 * 1024 * 1024, 4 * block_bytes)))

    kernel = functools.partial(_transformer_layer_kernel, inv_temp=float(1.0 / temperature))

    grid_spec = pltpu.PrefetchScalarGridSpec(
        num_scalar_prefetch=0,
        grid=(B // bt,),
        in_specs=[
            pl.BlockSpec((bt, Tq, D), lambda i: (i, 0, 0)),        # q
            pl.BlockSpec((bt, Lp, D), lambda i: (i, 0, 0)),        # kv (keys == values source)
            pl.BlockSpec((bt, Tq, Lp), lambda i: (i, 0, 0)),       # mask (int8)
            pl.BlockSpec((n_head, D, D), lambda i: (0, 0, 0)),     # per-head w_s
            pl.BlockSpec((n_head, D, D), lambda i: (0, 0, 0)),     # per-head w_v @ w_prj
            pl.BlockSpec((1, D), lambda i: (0, 0)),                # b_prj
            pl.BlockSpec((1, D), lambda i: (0, 0)),                # layernorm gamma
            pl.BlockSpec((1, D), lambda i: (0, 0)),                # layernorm beta
        ],
        out_specs=[
            pl.BlockSpec((bt, Tq, D), lambda i: (i, 0, 0)),
            pl.BlockSpec((bt, Tq, Lp), lambda i: (i, 0, 0)),
        ],
    )

    out, attn = pl.pallas_call(
        kernel,
        out_shape=(jax.ShapeDtypeStruct((B, Tq, D), jnp.float32),
                   jax.ShapeDtypeStruct((B, Tq, Lp), jnp.float32)),
        grid_spec=grid_spec,
        compiler_params=pltpu.CompilerParams(
            dimension_semantics=("parallel",),
            vmem_limit_bytes=vmem_limit),
    )(q_in, kv_in, mask_i8, ws, w2, b_prj, gamma, beta)

    if pad:
        attn = attn[:, :, :L]                    # strip lane padding from the attention map
    return out, attn


def _reference(node_enc, neigh_enc, attn_mask, w_s, w_v, w_prj, b_prj, gamma, beta, temperature):
    """Pure-JAX re-implementation of the PyTorch forward (HIGHEST-precision matmuls)."""
    hi = lax.Precision.HIGHEST
    B, N, T, D = neigh_enc.shape
    L = N * T
    n_head = w_s.shape[0]
    kv = neigh_enc.reshape(B, L, D)
    attn_sum = jnp.zeros((B, node_enc.shape[1], L), jnp.float32)
    outs = []
    for h in range(n_head):
        s = jnp.einsum('bqd,de->bqe', node_enc, w_s[h], precision=hi)
        scores = jnp.einsum('bqd,bkd->bqk', s, kv, precision=hi)
        scores = jnp.where(attn_mask, -jnp.inf, scores) / temperature
        a = jax.nn.softmax(scores, axis=-1)
        attn_sum = attn_sum + a
        v_h = jnp.einsum('bkd,de->bke', kv, w_v[h], precision=hi)
        outs.append(jnp.einsum('bqk,bkd->bqd', a, v_h, precision=hi))
    concat = jnp.concatenate(outs, axis=-1)
    proj = jax.nn.relu(jnp.einsum('bqf,fe->bqe', concat, w_prj, precision=hi) + b_prj)
    mean = proj.mean(-1, keepdims=True)
    var = ((proj - mean) ** 2).mean(-1, keepdims=True)
    out = (proj - mean) / jnp.sqrt(var + EPS) * gamma + beta
    return out, attn_sum


if __name__ == "__main__":
    key = jax.random.PRNGKey(0)
    B, N, T, D, Tq, n_head = 2, 2, 4, 32, 8, 2
    L = N * T

    ks = jax.random.split(key, 7)
    node_enc = jax.random.normal(ks[0], (B, Tq, D), jnp.float32)
    neigh_enc = jax.random.normal(ks[1], (B, N, T, D), jnp.float32)
    attn_mask = jax.random.uniform(ks[2], (B, Tq, L)) < 0.2       # bool, True = masked
    attn_mask = attn_mask.at[:, :, 0].set(False)                  # keep every row attendable

    # Deterministic parameter init (the torch module leaves w_s/w_v uninitialized).
    w_s = 0.1 * jax.random.normal(ks[3], (n_head, D, D), jnp.float32)
    w_v = 0.1 * jax.random.normal(ks[4], (n_head, D, D), jnp.float32)
    w_prj = 0.1 * jax.random.normal(ks[5], (n_head * D, D), jnp.float32)  # torch Linear weight.T
    b_prj = 0.1 * jax.random.normal(ks[6], (1, D), jnp.float32)
    gamma = jnp.ones((1, D), jnp.float32)
    beta = jnp.zeros((1, D), jnp.float32)

    out, slf_attn = transformer_layer(node_enc, neigh_enc, attn_mask,
                                      w_s, w_v, w_prj, b_prj, gamma, beta,
                                      temperature=1.0)
    jax.block_until_ready((out, slf_attn))
    assert out.shape == (B, Tq, D) and slf_attn.shape == (B, Tq, L)

    ref_out, ref_attn = _reference(node_enc, neigh_enc, attn_mask,
                                   w_s, w_v, w_prj, b_prj, gamma, beta, 1.0)
    assert bool(jnp.allclose(out, ref_out, rtol=2e-2, atol=2e-2)), \
        float(jnp.max(jnp.abs(out - ref_out)))
    assert bool(jnp.allclose(slf_attn, ref_attn, rtol=2e-2, atol=2e-2)), \
        float(jnp.max(jnp.abs(slf_attn - ref_attn)))
    print("KERNEL_OK")
</pallas_src>

<mosaic_0001>
module attributes {stable_mosaic.version = 11 : i64} {
  func.func @_transformer_layer_kernel(%arg0: i32, %arg1: memref<1x8x32xf32, #tpu.memory_space<vmem>>, %arg2: memref<1x128x32xf32, #tpu.memory_space<vmem>>, %arg3: memref<1x8x128xi8, #tpu.memory_space<vmem>>, %arg4: memref<2x32x32xf32, #tpu.memory_space<vmem>>, %arg5: memref<2x32x32xf32, #tpu.memory_space<vmem>>, %arg6: memref<1x32xf32, #tpu.memory_space<vmem>>, %arg7: memref<1x32xf32, #tpu.memory_space<vmem>>, %arg8: memref<1x32xf32, #tpu.memory_space<vmem>>, %arg9: memref<1x8x32xf32, #tpu.memory_space<vmem>>, %arg10: memref<1x8x128xf32, #tpu.memory_space<vmem>>) attributes {dimension_semantics = [#tpu.dimension_semantics<parallel>], iteration_bounds = array<i64: 2>, scalar_prefetch = 0 : i64, scratch_operands = 0 : i64, tpu.core_type = #tpu.core_type<tc>, window_params = [{transform_indices = @transform_0, window_bounds = array<i64: 1, 8, 32>}, {transform_indices = @transform_1, window_bounds = array<i64: 1, 128, 32>}, {transform_indices = @transform_2, window_bounds = array<i64: 1, 8, 128>}, {pipeline_mode = #tpu.pipeline_mode<synchronous>, transform_indices = @transform_3, window_bounds = array<i64: 2, 32, 32>}, {pipeline_mode = #tpu.pipeline_mode<synchronous>, transform_indices = @transform_4, window_bounds = array<i64: 2, 32, 32>}, {pipeline_mode = #tpu.pipeline_mode<synchronous>, transform_indices = @transform_5, window_bounds = array<i64: 1, 32>}, {pipeline_mode = #tpu.pipeline_mode<synchronous>, transform_indices = @transform_6, window_bounds = array<i64: 1, 32>}, {pipeline_mode = #tpu.pipeline_mode<synchronous>, transform_indices = @transform_7, window_bounds = array<i64: 1, 32>}, {transform_indices = @transform_8, window_bounds = array<i64: 1, 8, 32>}, {transform_indices = @transform_9, window_bounds = array<i64: 1, 8, 128>}]} {
    %c0 = arith.constant 0 : index
    %c0_0 = arith.constant 0 : index
    %c0_1 = arith.constant 0 : index
    %0 = vector.load %arg1[%c0, %c0_0, %c0_1] : memref<1x8x32xf32, #tpu.memory_space<vmem>>, vector<1x8x32xf32>
    %1 = vector.shape_cast %0 : vector<1x8x32xf32> to vector<8x32xf32>
    %c0_2 = arith.constant 0 : index
    %c0_3 = arith.constant 0 : index
    %c0_4 = arith.constant 0 : index
    %2 = vector.load %arg2[%c0_2, %c0_3, %c0_4] : memref<1x128x32xf32, #tpu.memory_space<vmem>>, vector<1x128x32xf32>
    %c0_5 = arith.constant 0 : index
    %c0_6 = arith.constant 0 : index
    %c0_7 = arith.constant 0 : index
    %3 = vector.load %arg3[%c0_5, %c0_6, %c0_7] : memref<1x8x128xi8, #tpu.memory_space<vmem>>, vector<1x8x128xi8>
    %4 = arith.sitofp %3 : vector<1x8x128xi8> to vector<1x8x128xf32>
    %cst = arith.constant -1.000000e+30 : f32
    %5 = vector.broadcast %cst : f32 to vector<1x8x128xf32>
    %6 = arith.mulf %4, %5 : vector<1x8x128xf32>
    %cst_8 = arith.constant 0.000000e+00 : f32
    %7 = vector.broadcast %cst_8 : f32 to vector<1x8x128xf32>
    %cst_9 = arith.constant 0.000000e+00 : f32
    %8 = vector.broadcast %cst_9 : f32 to vector<8x32xf32>
    %c0_10 = arith.constant 0 : index
    %c0_11 = arith.constant 0 : index
    %c0_12 = arith.constant 0 : index
    %9 = vector.load %arg4[%c0_10, %c0_11, %c0_12] : memref<2x32x32xf32, #tpu.memory_space<vmem>>, vector<1x32x32xf32>
    %10 = vector.shape_cast %9 : vector<1x32x32xf32> to vector<32x32xf32>
    %cst_13 = arith.constant dense<0.000000e+00> : vector<8x32xf32>
    %11 = tpu.matmul %1, %10, %cst_13 {dimension_numbers = #tpu.dot_dimension_numbers<[1], [0], [0], [1], [0, 0, 1, 1], [], []>} : vector<8x32xf32>, vector<32x32xf32>, vector<8x32xf32> -> vector<8x32xf32>
    %12 = vector.shape_cast %11 : vector<8x32xf32> to vector<1x8x32xf32>
    "tpu.trace_start"() <{level = 10 : i32, message = "bqd,bkd->bqk"}> : () -> ()
    %cst_14 = arith.constant dense<0.000000e+00> : vector<1x8x128xf32>
    %13 = tpu.matmul %12, %2, %cst_14 {dimension_numbers = #tpu.dot_dimension_numbers<[2], [2], [1], [1], [0, 0, 0, 1, 1, 1], [0], [0]>} : vector<1x8x32xf32>, vector<1x128x32xf32>, vector<1x8x128xf32> -> vector<1x8x128xf32>
    "tpu.trace_stop"() : () -> ()
    %14 = arith.addf %13, %6 : vector<1x8x128xf32>
    %cst_15 = arith.constant dense<0xFF800000> : vector<1x8xf32>
    %15 = vector.multi_reduction <maximumf>, %14, %cst_15 [2] : vector<1x8x128xf32> to vector<1x8xf32>
    %16 = vector.shape_cast %15 : vector<1x8xf32> to vector<1x8x1xf32>
    %17 = vector.broadcast %16 : vector<1x8x1xf32> to vector<1x8x128xf32>
    %18 = arith.subf %14, %17 : vector<1x8x128xf32>
    %19 = math.exp %18 : vector<1x8x128xf32>
    %cst_16 = arith.constant dense<0.000000e+00> : vector<1x8xf32>
    %20 = vector.multi_reduction <add>, %19, %cst_16 [2] : vector<1x8x128xf32> to vector<1x8xf32>
    %21 = vector.shape_cast %20 : vector<1x8xf32> to vector<1x8x1xf32>
    %22 = vector.broadcast %21 : vector<1x8x1xf32> to vector<1x8x128xf32>
    %23 = arith.divf %19, %22 : vector<1x8x128xf32>
    %24 = arith.addf %7, %23 : vector<1x8x128xf32>
    "tpu.trace_start"() <{level = 10 : i32, message = "bqk,bkd->bqd"}> : () -> ()
    %cst_17 = arith.constant dense<0.000000e+00> : vector<1x8x32xf32>
    %25 = tpu.matmul %23, %2, %cst_17 {dimension_numbers = #tpu.dot_dimension_numbers<[2], [1], [1], [2], [0, 0, 0, 1, 1, 2], [0], [0]>} : vector<1x8x128xf32>, vector<1x128x32xf32>, vector<1x8x32xf32> -> vector<1x8x32xf32>
    "tpu.trace_stop"() : () -> ()
    %26 = vector.shape_cast %25 : vector<1x8x32xf32> to vector<8x32xf32>
    %c0_18 = arith.constant 0 : index
    %c0_19 = arith.constant 0 : index
    %c0_20 = arith.constant 0 : index
    %27 = vector.load %arg5[%c0_18, %c0_19, %c0_20] : memref<2x32x32xf32, #tpu.memory_space<vmem>>, vector<1x32x32xf32>
    %28 = vector.shape_cast %27 : vector<1x32x32xf32> to vector<32x32xf32>
    %cst_21 = arith.constant dense<0.000000e+00> : vector<8x32xf32>
    %29 = tpu.matmul %26, %28, %cst_21 {dimension_numbers = #tpu.dot_dimension_numbers<[1], [0], [0], [1], [0, 0, 1, 1], [], []>} : vector<8x32xf32>, vector<32x32xf32>, vector<8x32xf32> -> vector<8x32xf32>
    %30 = arith.addf %8, %29 : vector<8x32xf32>
    %c1 = arith.constant 1 : index
    %c0_22 = arith.constant 0 : index
    %c0_23 = arith.constant 0 : index
    %31 = vector.load %arg4[%c1, %c0_22, %c0_23] : memref<2x32x32xf32, #tpu.memory_space<vmem>>, vector<1x32x32xf32>
    %32 = vector.shape_cast %31 : vector<1x32x32xf32> to vector<32x32xf32>
    %cst_24 = arith.constant dense<0.000000e+00> : vector<8x32xf32>
    %33 = tpu.matmul %1, %32, %cst_24 {dimension_numbers = #tpu.dot_dimension_numbers<[1], [0], [0], [1], [0, 0, 1, 1], [], []>} : vector<8x32xf32>, vector<32x32xf32>, vector<8x32xf32> -> vector<8x32xf32>
    %34 = vector.shape_cast %33 : vector<8x32xf32> to vector<1x8x32xf32>
    "tpu.trace_start"() <{level = 10 : i32, message = "bqd,bkd->bqk"}> : () -> ()
    %cst_25 = arith.constant dense<0.000000e+00> : vector<1x8x128xf32>
    %35 = tpu.matmul %34, %2, %cst_25 {dimension_numbers = #tpu.dot_dimension_numbers<[2], [2], [1], [1], [0, 0, 0, 1, 1, 1], [0], [0]>} : vector<1x8x32xf32>, vector<1x128x32xf32>, vector<1x8x128xf32> -> vector<1x8x128xf32>
    "tpu.trace_stop"() : () -> ()
    %36 = arith.addf %35, %6 : vector<1x8x128xf32>
    %cst_26 = arith.constant dense<0xFF800000> : vector<1x8xf32>
    %37 = vector.multi_reduction <maximumf>, %36, %cst_26 [2] : vector<1x8x128xf32> to vector<1x8xf32>
    %38 = vector.shape_cast %37 : vector<1x8xf32> to vector<1x8x1xf32>
    %39 = vector.broadcast %38 : vector<1x8x1xf32> to vector<1x8x128xf32>
    %40 = arith.subf %36, %39 : vector<1x8x128xf32>
    %41 = math.exp %40 : vector<1x8x128xf32>
    %cst_27 = arith.constant dense<0.000000e+00> : vector<1x8xf32>
    %42 = vector.multi_reduction <add>, %41, %cst_27 [2] : vector<1x8x128xf32> to vector<1x8xf32>
    %43 = vector.shape_cast %42 : vector<1x8xf32> to vector<1x8x1xf32>
    %44 = vector.broadcast %43 : vector<1x8x1xf32> to vector<1x8x128xf32>
    %45 = arith.divf %41, %44 : vector<1x8x128xf32>
    %46 = arith.addf %24, %45 : vector<1x8x128xf32>
    "tpu.trace_start"() <{level = 10 : i32, message = "bqk,bkd->bqd"}> : () -> ()
    %cst_28 = arith.constant dense<0.000000e+00> : vector<1x8x32xf32>
    %47 = tpu.matmul %45, %2, %cst_28 {dimension_numbers = #tpu.dot_dimension_numbers<[2], [1], [1], [2], [0, 0, 0, 1, 1, 2], [0], [0]>} : vector<1x8x128xf32>, vector<1x128x32xf32>, vector<1x8x32xf32> -> vector<1x8x32xf32>
    "tpu.trace_stop"() : () -> ()
    %48 = vector.shape_cast %47 : vector<1x8x32xf32> to vector<8x32xf32>
    %c1_29 = arith.constant 1 : index
    %c0_30 = arith.constant 0 : index
    %c0_31 = arith.constant 0 : index
    %49 = vector.load %arg5[%c1_29, %c0_30, %c0_31] : memref<2x32x32xf32, #tpu.memory_space<vmem>>, vector<1x32x32xf32>
    %50 = vector.shape_cast %49 : vector<1x32x32xf32> to vector<32x32xf32>
    %cst_32 = arith.constant dense<0.000000e+00> : vector<8x32xf32>
    %51 = tpu.matmul %48, %50, %cst_32 {dimension_numbers = #tpu.dot_dimension_numbers<[1], [0], [0], [1], [0, 0, 1, 1], [], []>} : vector<8x32xf32>, vector<32x32xf32>, vector<8x32xf32> -> vector<8x32xf32>
    %52 = arith.addf %30, %51 : vector<8x32xf32>
    %c0_33 = arith.constant 0 : index
    %c0_34 = arith.constant 0 : index
    %53 = vector.load %arg6[%c0_33, %c0_34] : memref<1x32xf32, #tpu.memory_space<vmem>>, vector<1x32xf32>
    %54 = vector.broadcast %53 : vector<1x32xf32> to vector<8x32xf32>
    %55 = arith.addf %52, %54 : vector<8x32xf32>
    %cst_35 = arith.constant 0.000000e+00 : f32
    %56 = vector.broadcast %cst_35 : f32 to vector<8x32xf32>
    %57 = arith.maximumf %55, %56 : vector<8x32xf32>
    %cst_36 = arith.constant dense<0.000000e+00> : vector<8xf32>
    %58 = vector.multi_reduction <add>, %57, %cst_36 [1] : vector<8x32xf32> to vector<8xf32>
    %59 = vector.shape_cast %58 : vector<8xf32> to vector<8x1xf32>
    %cst_37 = arith.constant 3.200000e+01 : f32
    %60 = vector.broadcast %cst_37 : f32 to vector<8x1xf32>
    %61 = arith.divf %59, %60 : vector<8x1xf32>
    %62 = vector.broadcast %61 : vector<8x1xf32> to vector<8x32xf32>
    %63 = arith.subf %57, %62 : vector<8x32xf32>
    %64 = arith.mulf %63, %63 : vector<8x32xf32>
    %cst_38 = arith.constant dense<0.000000e+00> : vector<8xf32>
    %65 = vector.multi_reduction <add>, %64, %cst_38 [1] : vector<8x32xf32> to vector<8xf32>
    %66 = vector.shape_cast %65 : vector<8xf32> to vector<8x1xf32>
    %cst_39 = arith.constant 3.200000e+01 : f32
    %67 = vector.broadcast %cst_39 : f32 to vector<8x1xf32>
    %68 = arith.divf %66, %67 : vector<8x1xf32>
    %69 = vector.broadcast %61 : vector<8x1xf32> to vector<8x32xf32>
    %70 = arith.subf %57, %69 : vector<8x32xf32>
    %cst_40 = arith.constant 9.99999997E-7 : f32
    %71 = vector.broadcast %cst_40 : f32 to vector<8x1xf32>
    %72 = arith.addf %68, %71 : vector<8x1xf32>
    %73 = math.rsqrt %72 : vector<8x1xf32>
    %74 = vector.broadcast %73 : vector<8x1xf32> to vector<8x32xf32>
    %75 = arith.mulf %70, %74 : vector<8x32xf32>
    %c0_41 = arith.constant 0 : index
    %c0_42 = arith.constant 0 : index
    %76 = vector.load %arg7[%c0_41, %c0_42] : memref<1x32xf32, #tpu.memory_space<vmem>>, vector<1x32xf32>
    %77 = vector.broadcast %76 : vector<1x32xf32> to vector<8x32xf32>
    %78 = arith.mulf %75, %77 : vector<8x32xf32>
    %c0_43 = arith.constant 0 : index
    %c0_44 = arith.constant 0 : index
    %79 = vector.load %arg8[%c0_43, %c0_44] : memref<1x32xf32, #tpu.memory_space<vmem>>, vector<1x32xf32>
    %80 = vector.broadcast %79 : vector<1x32xf32> to vector<8x32xf32>
    %81 = arith.addf %78, %80 : vector<8x32xf32>
    %82 = vector.shape_cast %81 : vector<8x32xf32> to vector<1x8x32xf32>
    %c0_45 = arith.constant 0 : index
    %c0_46 = arith.constant 0 : index
    %c0_47 = arith.constant 0 : index
    %83 = vector.load %arg9[%c0_45, %c0_46, %c0_47] : memref<1x8x32xf32, #tpu.memory_space<vmem>>, vector<1x8x32xf32>
    tpu.vector_store %arg9[%c0_45, %c0_46, %c0_47], %82 {strides = array<i32>} : memref<1x8x32xf32, #tpu.memory_space<vmem>>, vector<1x8x32xf32>,
    %c0_48 = arith.constant 0 : index
    %c0_49 = arith.constant 0 : index
    %c0_50 = arith.constant 0 : index
    %84 = vector.load %arg10[%c0_48, %c0_49, %c0_50] : memref<1x8x128xf32, #tpu.memory_space<vmem>>, vector<1x8x128xf32>
    tpu.vector_store %arg10[%c0_48, %c0_49, %c0_50], %46 {strides = array<i32>} : memref<1x8x128xf32, #tpu.memory_space<vmem>>, vector<1x8x128xf32>,
    return
  }
  func.func @transform_0(%arg0: i32) -> (i32, i32, i32) {
    %c0_i32 = arith.constant 0 : i32
    %c0_i32_0 = arith.constant 0 : i32
    %c0_i32_1 = arith.constant 0 : i32
    return %arg0, %c0_i32, %c0_i32_0 : i32, i32, i32
  }
  func.func @transform_1(%arg0: i32) -> (i32, i32, i32) {
    %c0_i32 = arith.constant 0 : i32
    %c0_i32_0 = arith.constant 0 : i32
    %c0_i32_1 = arith.constant 0 : i32
    return %arg0, %c0_i32, %c0_i32_0 : i32, i32, i32
  }
  func.func @transform_2(%arg0: i32) -> (i32, i32, i32) {
    %c0_i32 = arith.constant 0 : i32
    %c0_i32_0 = arith.constant 0 : i32
    %c0_i32_1 = arith.constant 0 : i32
    return %arg0, %c0_i32, %c0_i32_0 : i32, i32, i32
  }
  func.func @transform_3(%arg0: i32) -> (i32, i32, i32) {
    %c0_i32 = arith.constant 0 : i32
    %c0_i32_0 = arith.constant 0 : i32
    %c0_i32_1 = arith.constant 0 : i32
    %c0_i32_2 = arith.constant 0 : i32
    return %c0_i32, %c0_i32_0, %c0_i32_1 : i32, i32, i32
  }
  func.func @transform_4(%arg0: i32) -> (i32, i32, i32) {
    %c0_i32 = arith.constant 0 : i32
    %c0_i32_0 = arith.constant 0 : i32
    %c0_i32_1 = arith.constant 0 : i32
    %c0_i32_2 = arith.constant 0 : i32
    return %c0_i32, %c0_i32_0, %c0_i32_1 : i32, i32, i32
  }
  func.func @transform_5(%arg0: i32) -> (i32, i32) {
    %c0_i32 = arith.constant 0 : i32
    %c0_i32_0 = arith.constant 0 : i32
    %c0_i32_1 = arith.constant 0 : i32
    return %c0_i32, %c0_i32_0 : i32, i32
  }
  func.func @transform_6(%arg0: i32) -> (i32, i32) {
    %c0_i32 = arith.constant 0 : i32
    %c0_i32_0 = arith.constant 0 : i32
    %c0_i32_1 = arith.constant 0 : i32
    return %c0_i32, %c0_i32_0 : i32, i32
  }
  func.func @transform_7(%arg0: i32) -> (i32, i32) {
    %c0_i32 = arith.constant 0 : i32
    %c0_i32_0 = arith.constant 0 : i32
    %c0_i32_1 = arith.constant 0 : i32
    return %c0_i32, %c0_i32_0 : i32, i32
  }
  func.func @transform_8(%arg0: i32) -> (i32, i32, i32) {
    %c0_i32 = arith.constant 0 : i32
    %c0_i32_0 = arith.constant 0 : i32
    %c0_i32_1 = arith.constant 0 : i32
    return %arg0, %c0_i32, %c0_i32_0 : i32, i32, i32
  }
  func.func @transform_9(%arg0: i32) -> (i32, i32, i32) {
    %c0_i32 = arith.constant 0 : i32
    %c0_i32_0 = arith.constant 0 : i32
    %c0_i32_1 = arith.constant 0 : i32
    return %arg0, %c0_i32, %c0_i32_0 : i32, i32, i32
  }
}

</mosaic_0001>

<llo_original>
// kernel: tpu_custom_call.1
$region0: #{tpu_custom_call.1}
  #allocation0 [shape = 'u32[]', space=smem, size = 0x4, offset = 0x4, fixed_abs, tag = 'smem constant byte address 0x4 - core index']
  #allocation1 [shape = 'u32[144,128]{1,0:T(1,128)}', space=vmem, size = 0x12000, scoped, tag = 'internal scratch']
  %s0 = inlined_call_operand.vmem [shape: f32[2,8,32], index: 0, kind: input, shape index: {}]
  %s1 = inlined_call_operand.vmem [shape: f32[2,128,32], index: 1, kind: input, shape index: {}]
  %s2 = inlined_call_operand.vmem [shape: s8[2,8,128], index: 2, kind: input, shape index: {}]
  %s3 = inlined_call_operand.vmem [shape: f32[2,32,32], index: 3, kind: input, shape index: {}]
  %s4 = inlined_call_operand.vmem [shape: f32[2,32,32], index: 4, kind: input, shape index: {}]
  %s5 = inlined_call_operand.vmem [shape: f32[1,32], index: 5, kind: input, shape index: {}]
  %s6 = inlined_call_operand.vmem [shape: f32[1,32], index: 6, kind: input, shape index: {}]
  %s7 = inlined_call_operand.vmem [shape: f32[1,32], index: 7, kind: input, shape index: {}]
  %s8 = inlined_call_operand.hbm [shape: f32[2,8,32], index: 8, kind: output, shape index: {0}]
  %s9 = inlined_call_operand.hbm [shape: f32[2,8,128], index: 9, kind: output, shape index: {1}]
  %10 = xla_tuple %s8, %s9
  %s11 = sld [smem:[#allocation0]]
  $region73: #{tpu_custom_call.1} parent=0
    _
  %s13 = ssub.s32 1, %s11
  %s14 = scalar_select 0, %s13, %s11
  $region1: #{tpu_custom_call.1} parent=0
    #allocation2 [shape = 'u8[8192]{0}', space=vmem, size = 0x2000, scoped, tag = 'output window, operand 0']
    #allocation3 [shape = 's32[2]{0}', space=sflag, size = 0x8, scoped, tag = 'scoped memory for tpu_custom_call.1']
    #allocation4 [shape = 'u8[8192]{0}', space=vmem, size = 0x2000, scoped, tag = 'output window, operand 1']
    #allocation5 [shape = 's32[2]{0}', space=sflag, size = 0x8, scoped, tag = 'scoped memory for tpu_custom_call.1']
    %15 = vsyncpa [#allocation3], 0
    %s16 = scalar_lea.sflag [#allocation3], 1
    %17 = vsyncpa %s16, 0
    %18 = vsyncpa [#allocation5], 0
    %s19 = scalar_lea.sflag [#allocation5], 1
    %20 = vsyncpa %s19, 0
    loop: start=0, step=1, limit=4
    $region2: #{tpu_custom_call.1} parent=1 // loop_pre_header
      _
    $region3: #{tpu_custom_call.1} parent=1 // loop_header
      %s22 = sphi 0, %s26
      %p23 = scmp.ge.s32.totalorder %s22, 4
      %s32 = sphi 0, %s34
      %s35 = sphi 0, %s32
      %s36 = sphi 0, %s35
      %s52 = sphi 0, %s36
      %s58 = sphi 0, %s60
      %s61 = sphi 0, %s58
      %s62 = sphi 0, %s61
      %s78 = sphi 0, %s62
      %s84 = sphi 0, %s86
      %s87 = sphi 0, %s84
      %s88 = sphi 0, %s87
      %s104 = sphi 0, %s88
      %s108 = sphi 0, %s108
      %s110 = sphi 0, %s108
      %s111 = sphi 0, %s110
      %s125 = sphi 0, %s111
      %s129 = sphi 0, %s129
      %s131 = sphi 0, %s129
      %s132 = sphi 0, %s131
      %s146 = sphi 0, %s132
      %s150 = sphi 0, %s150
      %s152 = sphi 0, %s150
      %s153 = sphi 0, %s152
      %s167 = sphi 0, %s153
      %s171 = sphi 0, %s171
      %s173 = sphi 0, %s171
      %s174 = sphi 0, %s173
      %s188 = sphi 0, %s174
      %s192 = sphi 0, %s192
      %s194 = sphi 0, %s192
      %s195 = sphi 0, %s194
      %s209 = sphi 0, %s195
      %s215 = sphi 0, %s217
      %s218 = sphi 0, %s215
      %s219 = sphi 0, %s218
      %s235 = sphi 0, %s219
      %s241 = sphi 0, %s243
      %s244 = sphi 0, %s241
      %s245 = sphi 0, %s244
      %s261 = sphi 0, %s245
    $region4: #{tpu_custom_call.1} parent=1 // loop_header_branch
      %25 = sbr.rel (%p23) target = $region8
    $region5: #{tpu_custom_call.1} parent=1 // loop_body
      %s27 = ssub.s32 %s22, 1
      %s28 = ssub.s32 %s22, 2
      %s29 = sadd.s32 %s22, 1
      %s30 = ssub.s32 %s22, %s29
      %p31 = scmp.eq.s32.totalorder %s30, 0
      %s33 = sadd.s32 %s32, 1
      %s34 = scalar_select %p31, %s32, %s33
      %p37 = pneg %p31
      %p38 = scmp.eq.s32.totalorder %s22, 1
      %p39 = por %p37, %p38
      %p40 = scmp.ne.s32.totalorder %s32, %s35
      %p41 = scmp.eq.s32.totalorder %s22, 0
      %p42 = por %p40, %p41
      %p43 = scmp.ne.s32.totalorder %s32, %s35
      %p44 = scmp.eq.s32.totalorder %s27, 1
      %p45 = por %p43, %p44
      %p46 = scmp.ne.s32.totalorder %s35, %s36
      %p47 = scmp.eq.s32.totalorder %s27, 0
      %p48 = por %p46, %p47
      %p49 = scmp.ne.s32.totalorder %s35, %s36
      %p50 = scmp.eq.s32.totalorder %s28, 1
      %p51 = por %p49, %p50
      %p53 = scmp.ne.s32.totalorder %s36, %s52
      %p54 = scmp.eq.s32.totalorder %s28, 0
      %p55 = por %p53, %p54
      %s56 = ssub.s32 %s22, %s29
      %p57 = scmp.eq.s32.totalorder %s56, 0
      %s59 = sadd.s32 %s58, 1
      %s60 = scalar_select %p57, %s58, %s59
      %p63 = pneg %p57
      %p64 = scmp.eq.s32.totalorder %s22, 1
      %p65 = por %p63, %p64
      %p66 = scmp.ne.s32.totalorder %s58, %s61
      %p67 = scmp.eq.s32.totalorder %s22, 0
      %p68 = por %p66, %p67
      %p69 = scmp.ne.s32.totalorder %s58, %s61
      %p70 = scmp.eq.s32.totalorder %s27, 1
      %p71 = por %p69, %p70
      %p72 = scmp.ne.s32.totalorder %s61, %s62
      %p73 = scmp.eq.s32.totalorder %s27, 0
      %p74 = por %p72, %p73
      %p75 = scmp.ne.s32.totalorder %s61, %s62
      %p76 = scmp.eq.s32.totalorder %s28, 1
      %p77 = por %p75, %p76
      %p79 = scmp.ne.s32.totalorder %s62, %s78
      %p80 = scmp.eq.s32.totalorder %s28, 0
      %p81 = por %p79, %p80
      %s82 = ssub.s32 %s22, %s29
      %p83 = scmp.eq.s32.totalorder %s82, 0
      %s85 = sadd.s32 %s84, 1
      %s86 = scalar_select %p83, %s84, %s85
      %p89 = pneg %p83
      %p90 = scmp.eq.s32.totalorder %s22, 1
      %p91 = por %p89, %p90
      %p92 = scmp.ne.s32.totalorder %s84, %s87
      %p93 = scmp.eq.s32.totalorder %s22, 0
      %p94 = por %p92, %p93
      %p95 = scmp.ne.s32.totalorder %s84, %s87
      %p96 = scmp.eq.s32.totalorder %s27, 1
      %p97 = por %p95, %p96
      %p98 = scmp.ne.s32.totalorder %s87, %s88
      %p99 = scmp.eq.s32.totalorder %s27, 0
      %p100 = por %p98, %p99
      %p101 = scmp.ne.s32.totalorder %s87, %s88
      %p102 = scmp.eq.s32.totalorder %s28, 1
      %p103 = por %p101, %p102
      %p105 = scmp.ne.s32.totalorder %s88, %s104
      %p106 = scmp.eq.s32.totalorder %s28, 0
      %p107 = por %p105, %p106
      %s109 = sadd.s32 %s108, 1
      %p112 = scmp.eq.s32.totalorder %s22, 1
      %p113 = scmp.ne.s32.totalorder %s108, %s110
      %p114 = scmp.eq.s32.totalorder %s22, 0
      %p115 = por %p113, %p114
      %p116 = scmp.ne.s32.totalorder %s108, %s110
      %p117 = scmp.eq.s32.totalorder %s27, 1
      %p118 = por %p116, %p117
      %p119 = scmp.ne.s32.totalorder %s110, %s111
      %p120 = scmp.eq.s32.totalorder %s27, 0
      %p121 = por %p119, %p120
      %p122 = scmp.ne.s32.totalorder %s110, %s111
      %p123 = scmp.eq.s32.totalorder %s28, 1
      %p124 = por %p122, %p123
      %p126 = scmp.ne.s32.totalorder %s111, %s125
      %p127 = scmp.eq.s32.totalorder %s28, 0
      %p128 = por %p126, %p127
      %s130 = sadd.s32 %s129, 1
      %p133 = scmp.eq.s32.totalorder %s22, 1
      %p134 = scmp.ne.s32.totalorder %s129, %s131
      %p135 = scmp.eq.s32.totalorder %s22, 0
      %p136 = por %p134, %p135
      %p137 = scmp.ne.s32.totalorder %s129, %s131
      %p138 = scmp.eq.s32.totalorder %s27, 1
      %p139 = por %p137, %p138
      %p140 = scmp.ne.s32.totalorder %s131, %s132
      %p141 = scmp.eq.s32.totalorder %s27, 0
      %p142 = por %p140, %p141
      %p143 = scmp.ne.s32.totalorder %s131, %s132
      %p144 = scmp.eq.s32.totalorder %s28, 1
      %p145 = por %p143, %p144
      %p147 = scmp.ne.s32.totalorder %s132, %s146
      %p148 = scmp.eq.s32.totalorder %s28, 0
      %p149 = por %p147, %p148
      %s151 = sadd.s32 %s150, 1
      %p154 = scmp.eq.s32.totalorder %s22, 1
      %p155 = scmp.ne.s32.totalorder %s150, %s152
      %p156 = scmp.eq.s32.totalorder %s22, 0
      %p157 = por %p155, %p156
      %p158 = scmp.ne.s32.totalorder %s150, %s152
      %p159 = scmp.eq.s32.totalorder %s27, 1
      %p160 = por %p158, %p159
      %p161 = scmp.ne.s32.totalorder %s152, %s153
      %p162 = scmp.eq.s32.totalorder %s27, 0
      %p163 = por %p161, %p162
      %p164 = scmp.ne.s32.totalorder %s152, %s153
      %p165 = scmp.eq.s32.totalorder %s28, 1
      %p166 = por %p164, %p165
      %p168 = scmp.ne.s32.totalorder %s153, %s167
      %p169 = scmp.eq.s32.totalorder %s28, 0
      %p170 = por %p168, %p169
      %s172 = sadd.s32 %s171, 1
      %p175 = scmp.eq.s32.totalorder %s22, 1
      %p176 = scmp.ne.s32.totalorder %s171, %s173
      %p177 = scmp.eq.s32.totalorder %s22, 0
      %p178 = por %p176, %p177
      %p179 = scmp.ne.s32.totalorder %s171, %s173
      %p180 = scmp.eq.s32.totalorder %s27, 1
      %p181 = por %p179, %p180
      %p182 = scmp.ne.s32.totalorder %s173, %s174
      %p183 = scmp.eq.s32.totalorder %s27, 0
      %p184 = por %p182, %p183
      %p185 = scmp.ne.s32.totalorder %s173, %s174
      %p186 = scmp.eq.s32.totalorder %s28, 1
      %p187 = por %p185, %p186
      %p189 = scmp.ne.s32.totalorder %s174, %s188
      %p190 = scmp.eq.s32.totalorder %s28, 0
      %p191 = por %p189, %p190
      %s193 = sadd.s32 %s192, 1
      %p196 = scmp.eq.s32.totalorder %s22, 1
      %p197 = scmp.ne.s32.totalorder %s192, %s194
      %p198 = scmp.eq.s32.totalorder %s22, 0
      %p199 = por %p197, %p198
      %p200 = scmp.ne.s32.totalorder %s192, %s194
      %p201 = scmp.eq.s32.totalorder %s27, 1
      %p202 = por %p200, %p201
      %p203 = scmp.ne.s32.totalorder %s194, %s195
      %p204 = scmp.eq.s32.totalorder %s27, 0
      %p205 = por %p203, %p204
      %p206 = scmp.ne.s32.totalorder %s194, %s195
      %p207 = scmp.eq.s32.totalorder %s28, 1
      %p208 = por %p206, %p207
      %p210 = scmp.ne.s32.totalorder %s195, %s209
      %p211 = scmp.eq.s32.totalorder %s28, 0
      %p212 = por %p210, %p211
      %s213 = ssub.s32 %s22, %s29
      %p214 = scmp.eq.s32.totalorder %s213, 0
      %s216 = sadd.s32 %s215, 1
      %s217 = scalar_select %p214, %s215, %s216
      %p220 = pneg %p214
      %p221 = scmp.eq.s32.totalorder %s22, 1
      %p222 = por %p220, %p221
      %p223 = scmp.ne.s32.totalorder %s215, %s218
      %p224 = scmp.eq.s32.totalorder %s22, 0
      %p225 = por %p223, %p224
      %p226 = scmp.ne.s32.totalorder %s215, %s218
      %p227 = scmp.eq.s32.totalorder %s27, 1
      %p228 = por %p226, %p227
      %p229 = scmp.ne.s32.totalorder %s218, %s219
      %p230 = scmp.eq.s32.totalorder %s27, 0
      %p231 = por %p229, %p230
      %p232 = scmp.ne.s32.totalorder %s218, %s219
      %p233 = scmp.eq.s32.totalorder %s28, 1
      %p234 = por %p232, %p233
      %p236 = scmp.ne.s32.totalorder %s219, %s235
      %p237 = scmp.eq.s32.totalorder %s28, 0
      %p238 = por %p236, %p237
      %s239 = ssub.s32 %s22, %s29
      %p240 = scmp.eq.s32.totalorder %s239, 0
      %s242 = sadd.s32 %s241, 1
      %s243 = scalar_select %p240, %s241, %s242
      %p246 = pneg %p240
      %p247 = scmp.eq.s32.totalorder %s22, 1
      %p248 = por %p246, %p247
      %p249 = scmp.ne.s32.totalorder %s241, %s244
      %p250 = scmp.eq.s32.totalorder %s22, 0
      %p251 = por %p249, %p250
      %p252 = scmp.ne.s32.totalorder %s241, %s244
      %p253 = scmp.eq.s32.totalorder %s27, 1
      %p254 = por %p252, %p253
      %p255 = scmp.ne.s32.totalorder %s244, %s245
      %p256 = scmp.eq.s32.totalorder %s27, 0
      %p257 = por %p255, %p256
      %p258 = scmp.ne.s32.totalorder %s244, %s245
      %p259 = scmp.eq.s32.totalorder %s28, 1
      %p260 = por %p258, %p259
      %p262 = scmp.ne.s32.totalorder %s245, %s261
      %p263 = scmp.eq.s32.totalorder %s28, 0
      %p264 = por %p262, %p263
      %p265 = scmp.le.s32.totalorder 1, %s22
      %p266 = scmp.lt.s32.totalorder %s22, 3
      %p267 = pnand %p265, %p266
      %p268 = pneg %p267
      // Predicated region
      $region9: #{tpu_custom_call.1} parent=5 // pred_check
        _
      $region10: #{tpu_custom_call.1} parent=5 // pred_check_branch
        %270 = sbr.rel (%p267) target = $region12
      $region11: #{tpu_custom_call.1} parent=5 // pred_region
        %s271 = ssub.s32 %s22, 1
        // Predicated region
        $region13: #{tpu_custom_call.1} parent=11 // pred_check
          %p272 = pneg %p121
        $region14: #{tpu_custom_call.1} parent=11 // pred_check_branch
          %274 = sbr.rel (%p272) target = $region16
        $region15: #{tpu_custom_call.1} parent=11 // pred_region
          _
        $region16: #{tpu_custom_call.1} parent=11 // pred_fallthru
          _
        // Predicated region
        $region17: #{tpu_custom_call.1} parent=11 // pred_check
          %p275 = pneg %p142
        $region18: #{tpu_custom_call.1} parent=11 // pred_check_branch
          %277 = sbr.rel (%p275) target = $region20
        $region19: #{tpu_custom_call.1} parent=11 // pred_region
          _
        $region20: #{tpu_custom_call.1} parent=11 // pred_fallthru
          _
        // Predicated region
        $region21: #{tpu_custom_call.1} parent=11 // pred_check
          %p278 = pneg %p163
        $region22: #{tpu_custom_call.1} parent=11 // pred_check_branch
          %280 = sbr.rel (%p278) target = $region24
        $region23: #{tpu_custom_call.1} parent=11 // pred_region
          _
        $region24: #{tpu_custom_call.1} parent=11 // pred_fallthru
          _
        // Predicated region
        $region25: #{tpu_custom_call.1} parent=11 // pred_check
          %p281 = pneg %p184
        $region26: #{tpu_custom_call.1} parent=11 // pred_check_branch
          %283 = sbr.rel (%p281) target = $region28
        $region27: #{tpu_custom_call.1} parent=11 // pred_region
          _
        $region28: #{tpu_custom_call.1} parent=11 // pred_fallthru
          _
        // Predicated region
        $region29: #{tpu_custom_call.1} parent=11 // pred_check
          %p284 = pneg %p205
        $region30: #{tpu_custom_call.1} parent=11 // pred_check_branch
          %286 = sbr.rel (%p284) target = $region32
        $region31: #{tpu_custom_call.1} parent=11 // pred_region
          _
        $region32: #{tpu_custom_call.1} parent=11 // pred_fallthru
          _
      $region12: #{tpu_custom_call.1} parent=5 // pred_fallthru
        _
      %p287 = scmp.lt.s32.totalorder %s22, 2
      // Predicated region
      $region33: #{tpu_custom_call.1} parent=5 // pred_check
        %p288 = pneg %p287
      $region34: #{tpu_custom_call.1} parent=5 // pred_check_branch
        %290 = sbr.rel (%p288) target = $region36
      $region35: #{tpu_custom_call.1} parent=5 // pred_region
        // Predicated region
        $region37: #{tpu_custom_call.1} parent=35 // pred_check
          %p291 = pneg %p42
        $region38: #{tpu_custom_call.1} parent=35 // pred_check_branch
          %293 = sbr.rel (%p291) target = $region40
        $region39: #{tpu_custom_call.1} parent=35 // pred_region
          %p294 = scmp.lt.s32.totalorder %s22, 1
          %s295 = scalar_select %p294, %s22, 1
          %s296 = smul.addr %s295, 8
          %s297 = scalar_lea.vmem %s0, %s296
        $region40: #{tpu_custom_call.1} parent=35 // pred_fallthru
          _
        // Predicated region
        $region41: #{tpu_custom_call.1} parent=35 // pred_check
          %p298 = pneg %p68
        $region42: #{tpu_custom_call.1} parent=35 // pred_check_branch
          %300 = sbr.rel (%p298) target = $region44
        $region43: #{tpu_custom_call.1} parent=35 // pred_region
          %p301 = scmp.lt.s32.totalorder %s22, 1
          %s302 = scalar_select %p301, %s22, 1
          %s303 = smul.addr %s302, 16
          %s304 = smul.addr %s303, 8
          %s305 = scalar_lea.vmem %s1, %s304
        $region44: #{tpu_custom_call.1} parent=35 // pred_fallthru
          _
        // Predicated region
        $region45: #{tpu_custom_call.1} parent=35 // pred_check
          %p306 = pneg %p94
        $region46: #{tpu_custom_call.1} parent=35 // pred_check_branch
          %308 = sbr.rel (%p306) target = $region48
        $region47: #{tpu_custom_call.1} parent=35 // pred_region
          %p309 = scmp.lt.s32.totalorder %s22, 1
          %s310 = scalar_select %p309, %s22, 1
          %s311 = smul.addr %s310, 2
          %s312 = scalar_lea.vmem %s2, %s311
        $region48: #{tpu_custom_call.1} parent=35 // pred_fallthru
          _
      $region36: #{tpu_custom_call.1} parent=5 // pred_fallthru
        _
      %p313 = scmp.le.s32.totalorder 1, %s22
      %p314 = scmp.lt.s32.totalorder %s22, 3
      %p315 = pnand %p313, %p314
      %p316 = pneg %p315
      // Predicated region
      $region49: #{tpu_custom_call.1} parent=5 // pred_check
        _
      $region50: #{tpu_custom_call.1} parent=5 // pred_check_branch
        %318 = sbr.rel (%p315) target = $region52
      $region51: #{tpu_custom_call.1} parent=5 // pred_region
        %s319 = ssub.s32 %s22, 1
        %p320 = scmp.lt.s32.totalorder %s27, 1
        %s321 = scalar_select %p320, %s27, 1
        %s322 = smul.addr %s321, 8
        %s323 = scalar_lea.vmem %s0, %s322
        %p324 = pneg %p48
        %p325 = pneg %p45
        %p326 = scmp.lt.s32.totalorder %s27, 1
        %s327 = scalar_select %p326, %s27, 1
        %s328 = smul.addr %s327, 16
        %s329 = smul.addr %s328, 8
        %s330 = scalar_lea.vmem %s1, %s329
        %p331 = pneg %p74
        %p332 = pneg %p71
        %p333 = scmp.lt.s32.totalorder %s27, 1
        %s334 = scalar_select %p333, %s27, 1
        %s335 = smul.addr %s334, 2
        %s336 = scalar_lea.vmem %s2, %s335
        %p337 = pneg %p100
        %p338 = pneg %p97
        %p339 = pneg %p121
        %p340 = pneg %p118
        %p341 = pneg %p142
        %p342 = pneg %p139
        %p343 = pneg %p163
        %p344 = pneg %p160
        %p345 = pneg %p184
        %p346 = pneg %p181
        %p347 = pneg %p205
        %p348 = pneg %p202
        %p349 = pneg %p231
        %p350 = pneg %p228
        %s351 = sand.u32 %s218, 1
        %s352 = scalar_lea.sflag [#allocation3], %s351
        %s353 = sand.u32 %s218, 1
        %s354 = smul.addr %s353, 8
        %s355 = scalar_lea.vmem [#allocation2], %s354
        %p356 = pneg %p257
        %p357 = pneg %p254
        %s358 = sand.u32 %s244, 1
        %s359 = scalar_lea.sflag [#allocation5], %s358
        %s360 = sand.u32 %s244, 1
        %s361 = smul.addr %s360, 8
        %s362 = scalar_lea.vmem [#allocation4], %s361
        %p363 = scmp.lt.s32.totalorder %s27, 1
        %s364 = scalar_select %p363, %s27, 1
        %s365 = smul.addr %s364, 8
        %s366 = scalar_lea.vmem %s0, %s365
        %p367 = scmp.lt.s32.totalorder %s27, 1
        %s368 = scalar_select %p367, %s27, 1
        %s369 = smul.addr %s368, 16
        %s370 = smul.addr %s369, 8
        %s371 = scalar_lea.vmem %s1, %s370
        %p372 = scmp.lt.s32.totalorder %s27, 1
        %s373 = scalar_select %p372, %s27, 1
        %s374 = smul.addr %s373, 2
        %s375 = scalar_lea.vmem %s2, %s374
        %v376 = vld [vmem:[%s366] sm:$0xff]
        %v377 = vld [vmem:[%s371] sm:$0xff]
        %v378 = vld [vmem:[%s371 + $0x8] sm:$0xff]
        %v379 = vld [vmem:[%s371 + $0x10] sm:$0xff]
        %v380 = vld [vmem:[%s371 + $0x18] sm:$0xff]
        %v381 = vld [vmem:[%s371 + $0x20] sm:$0xff]
        %v382 = vld [vmem:[%s371 + $0x28] sm:$0xff]
        %v383 = vld [vmem:[%s371 + $0x30] sm:$0xff]
        %v384 = vld [vmem:[%s371 + $0x38] sm:$0xff]
        %v385 = vld [vmem:[%s371 + $0x40] sm:$0xff]
        %v386 = vld [vmem:[%s371 + $0x48] sm:$0xff]
        %v387 = vld [vmem:[%s371 + $0x50] sm:$0xff]
        %v388 = vld [vmem:[%s371 + $0x58] sm:$0xff]
        %v389 = vld [vmem:[%s371 + $0x60] sm:$0xff]
        %v390 = vld [vmem:[%s371 + $0x68] sm:$0xff]
        %v391 = vld [vmem:[%s371 + $0x70] sm:$0xff]
        %v392 = vld [vmem:[%s371 + $0x78] sm:$0xff]
        %v393 = vld [vmem:[%s375] sm:$0x3]
        %v394 = vunpack.c.0.s8 %v393
        %v395 = vcvt.s32.f32 %v394
        %v396 = vmul.f32 %v395, -1e+30
        %v397 = vld [vmem:[%s3] sm:$0xff]
        %v398 = vld [vmem:[%s3 + $0x8] sm:$0xff]
        %v399 = vld [vmem:[%s3 + $0x10] sm:$0xff]
        %v400 = vld [vmem:[%s3 + $0x18] sm:$0xff]
        %vm401 = vcmask 261120
        %v403 = vsel %vm401, %v376, 0
        %405 = vmatprep.subr.mxu0 0.0
        %406 = vmatpush1.msra.mxu0 %v397
        %407 = vmatprep.subr.mxu0 0.0
        %408 = vmatpush1.msra.mxu0 %v398
        %409 = vmatprep.subr.mxu0 0.0
        %410 = vmatpush1.msra.mxu0 %v399
        %411 = vmatprep.subr.mxu0 0.0
        %412 = vmatpush1.msra.mxu0 %v400
        %413 = vmatprep.subr.mxu0 0.0
        %414 = vmatpush1.msra.mxu0 0.0
        %415 = vmatprep.subr.mxu0 0.0
        %416 = vmatpush1.msra.mxu0 0.0
        %417 = vmatprep.subr.mxu0 0.0
        %418 = vmatpush1.msra.mxu0 0.0
        %419 = vmatprep.subr.mxu0 0.0
        %420 = vmatpush1.msra.mxu0 0.0
        %421 = vmatprep.subr.mxu0 0.0
        %422 = vmatpush1.msra.mxu0 0.0
        %423 = vmatprep.subr.mxu0 0.0
        %424 = vmatpush1.msra.mxu0 0.0
        %425 = vmatprep.subr.mxu0 0.0
        %426 = vmatpush1.msra.mxu0 0.0
        %427 = vmatprep.subr.mxu0 0.0
        %428 = vmatpush1.msra.mxu0 0.0
        %429 = vmatprep.subr.mxu0 0.0
        %430 = vmatpush1.msra.mxu0 0.0
        %431 = vmatprep.subr.mxu0 0.0
        %432 = vmatpush1.msra.mxu0 0.0
        %433 = vmatprep.subr.mxu0 0.0
        %434 = vmatpush1.msra.mxu0 0.0
        %435 = vmatprep.subr.mxu0 0.0
        %436 = vmatpush1.msra.mxu0 0.0
        %437 = vmatprep.subr.mxu0 0.0
        %438 = vmatpush1.msra.mxu0 0.0
        %439 = vmatprep.subr.mxu0 0.0
        %440 = vmatpush1.msra.mxu0 0.0
        %441 = vmatprep.subr.mxu0 0.0
        %442 = vmatpush1.msra.mxu0 0.0
        %443 = vmatprep.subr.mxu0 0.0
        %444 = vmatpush1.msra.mxu0 0.0
        %445 = vmatprep.subr.mxu0 0.0
        %446 = vmatpush1.msra.mxu0 0.0
        %447 = vmatprep.subr.mxu0 0.0
        %448 = vmatpush1.msra.mxu0 0.0
        %449 = vmatprep.subr.mxu0 0.0
        %450 = vmatpush1.msra.mxu0 0.0
        %451 = vmatprep.subr.mxu0 0.0
        %452 = vmatpush1.msra.mxu0 0.0
        %453 = vmatprep.subr.mxu0 0.0
        %454 = vmatpush1.msra.mxu0 0.0
        %455 = vmatprep.subr.mxu0 0.0
        %456 = vmatpush1.msra.mxu0 0.0
        %457 = vmatprep.subr.mxu0 0.0
        %458 = vmatpush1.msra.mxu0 0.0
        %459 = vmatprep.subr.mxu0 0.0
        %460 = vmatpush1.msra.mxu0 0.0
        %461 = vmatprep.subr.mxu0 0.0
        %462 = vmatpush1.msra.mxu0 0.0
        %463 = vmatprep.subr.mxu0 0.0
        %464 = vmatpush1.msra.mxu0 0.0
        %465 = vmatprep.subr.mxu0 0.0
        %466 = vmatpush1.msra.mxu0 0.0
        %467 = vmatprep.subr.mxu0 0.0
        %468 = vmatpush1.msra.mxu0 0.0
        %469 = vmatprep.mubr.f32.mxu0 0.0
        %470 = vmatmul.mubr.f32.gmra.mrb[0].mxu0 %v403
        %v471 = vpop.f32.mrb[0].mxu0
        %v472 = vadd.f32 0.0, %v471
        %v473 = vpop.f32.mrb[0].mxu0
        %474 = vdwg.mxu0
        %v476 = vsel %vm401, %v472, 0
        %v479 = vsel %vm401, %v377, 0
        %v482 = vsel %vm401, %v378, 0
        %v485 = vsel %vm401, %v379, 0
        %v488 = vsel %vm401, %v380, 0
        %v491 = vsel %vm401, %v381, 0
        %v494 = vsel %vm401, %v382, 0
        %v497 = vsel %vm401, %v383, 0
        %v500 = vsel %vm401, %v384, 0
        %v503 = vsel %vm401, %v385, 0
        %v506 = vsel %vm401, %v386, 0
        %v509 = vsel %vm401, %v387, 0
        %v512 = vsel %vm401, %v388, 0
        %v515 = vsel %vm401, %v389, 0
        %v518 = vsel %vm401, %v390, 0
        %v521 = vsel %vm401, %v391, 0
        %v524 = vsel %vm401, %v392, 0
        %526 = vmatprep.subr.mxu0 0.0
        %527 = vmatpush1.xpose.msra.mxu0 %v479
        %528 = vmatprep.subr.mxu0 0.0
        %529 = vmatpush1.xpose.msra.mxu0 %v482
        %530 = vmatprep.subr.mxu0 0.0
        %531 = vmatpush1.xpose.msra.mxu0 %v485
        %532 = vmatprep.subr.mxu0 0.0
        %533 = vmatpush1.xpose.msra.mxu0 %v488
        %534 = vmatprep.subr.mxu0 0.0
        %535 = vmatpush1.xpose.msra.mxu0 %v491
        %536 = vmatprep.subr.mxu0 0.0
        %537 = vmatpush1.xpose.msra.mxu0 %v494
        %538 = vmatprep.subr.mxu0 0.0
        %539 = vmatpush1.xpose.msra.mxu0 %v497
        %540 = vmatprep.subr.mxu0 0.0
        %541 = vmatpush1.xpose.msra.mxu0 %v500
        %542 = vmatprep.subr.mxu0 0.0
        %543 = vmatpush1.xpose.msra.mxu0 %v503
        %544 = vmatprep.subr.mxu0 0.0
        %545 = vmatpush1.xpose.msra.mxu0 %v506
        %546 = vmatprep.subr.mxu0 0.0
        %547 = vmatpush1.xpose.msra.mxu0 %v509
        %548 = vmatprep.subr.mxu0 0.0
        %549 = vmatpush1.xpose.msra.mxu0 %v512
        %550 = vmatprep.subr.mxu0 0.0
        %551 = vmatpush1.xpose.msra.mxu0 %v515
        %552 = vmatprep.subr.mxu0 0.0
        %553 = vmatpush1.xpose.msra.mxu0 %v518
        %554 = vmatprep.subr.mxu0 0.0
        %555 = vmatpush1.xpose.msra.mxu0 %v521
        %556 = vmatprep.subr.mxu0 0.0
        %557 = vmatpush1.xpose.msra.mxu0 %v524
        %558 = vmatprep.subr.mxu0 0.0
        %559 = vmatpush1.xpose.msra.mxu0 0.0
        %560 = vmatprep.subr.mxu0 0.0
        %561 = vmatpush1.xpose.msra.mxu0 0.0
        %562 = vmatprep.subr.mxu0 0.0
        %563 = vmatpush1.xpose.msra.mxu0 0.0
        %564 = vmatprep.subr.mxu0 0.0
        %565 = vmatpush1.xpose.msra.mxu0 0.0
        %566 = vmatprep.subr.mxu0 0.0
        %567 = vmatpush1.xpose.msra.mxu0 0.0
        %568 = vmatprep.subr.mxu0 0.0
        %569 = vmatpush1.xpose.msra.mxu0 0.0
        %570 = vmatprep.subr.mxu0 0.0
        %571 = vmatpush1.xpose.msra.mxu0 0.0
        %572 = vmatprep.subr.mxu0 0.0
        %573 = vmatpush1.xpose.msra.mxu0 0.0
        %574 = vmatprep.subr.mxu0 0.0
        %575 = vmatpush1.xpose.msra.mxu0 0.0
        %576 = vmatprep.subr.mxu0 0.0
        %577 = vmatpush1.xpose.msra.mxu0 0.0
        %578 = vmatprep.subr.mxu0 0.0
        %579 = vmatpush1.xpose.msra.mxu0 0.0
        %580 = vmatprep.subr.mxu0 0.0
        %581 = vmatpush1.xpose.msra.mxu0 0.0
        %582 = vmatprep.subr.mxu0 0.0
        %583 = vmatpush1.xpose.msra.mxu0 0.0
        %584 = vmatprep.subr.mxu0 0.0
        %585 = vmatpush1.xpose.msra.mxu0 0.0
        %586 = vmatprep.subr.mxu0 0.0
        %587 = vmatpush1.xpose.msra.mxu0 0.0
        %588 = vmatprep.subr.mxu0 0.0
        %589 = vmatpush1.xpose.msra.mxu0 0.0
        %590 = vmatprep.mubr.f32.mxu0 0.0
        %591 = vmatmul.mubr.f32.gmra.mrb[0].mxu0 %v476
        %v592 = vpop.f32.mrb[0].mxu0
        %v593 = vadd.f32 %v396, %v592
        %v594 = vpop.f32.mrb[0].mxu0
        %595 = vdwg.mxu0
        %596 = vmax.xlane.f32.xlu0 %v593
        %v597 = vpop.xlane.xlu0 %596
        %v598 = vsub.f32 %v593, %v597
        %v599 = vmul.f32 %v598, 1.442695
        %v600 = vpow.pop %v599
        %601 = vadd.xlane.f32.xlu0 %v600
        %v602 = vpop.xlane.xlu0 %601
        %v603 = vrcp.pop %v602
        %v604 = vmul.f32 %v600, %v603
        %v605 = vadd.f32 %v604, 0.0
        %606 = vmatprep.subr.mxu0 0.0
        %607 = vmatpush1.msra.mxu0 %v377
        %608 = vmatprep.subr.mxu0 0.0
        %609 = vmatpush1.msra.mxu0 %v378
        %610 = vmatprep.subr.mxu0 0.0
        %611 = vmatpush1.msra.mxu0 %v379
        %612 = vmatprep.subr.mxu0 0.0
        %613 = vmatpush1.msra.mxu0 %v380
        %614 = vmatprep.subr.mxu0 0.0
        %615 = vmatpush1.msra.mxu0 %v381
        %616 = vmatprep.subr.mxu0 0.0
        %617 = vmatpush1.msra.mxu0 %v382
        %618 = vmatprep.subr.mxu0 0.0
        %619 = vmatpush1.msra.mxu0 %v383
        %620 = vmatprep.subr.mxu0 0.0
        %621 = vmatpush1.msra.mxu0 %v384
        %622 = vmatprep.subr.mxu0 0.0
        %623 = vmatpush1.msra.mxu0 %v385
        %624 = vmatprep.subr.mxu0 0.0
        %625 = vmatpush1.msra.mxu0 %v386
        %626 = vmatprep.subr.mxu0 0.0
        %627 = vmatpush1.msra.mxu0 %v387
        %628 = vmatprep.subr.mxu0 0.0
        %629 = vmatpush1.msra.mxu0 %v388
        %630 = vmatprep.subr.mxu0 0.0
        %631 = vmatpush1.msra.mxu0 %v389
        %632 = vmatprep.subr.mxu0 0.0
        %633 = vmatpush1.msra.mxu0 %v390
        %634 = vmatprep.subr.mxu0 0.0
        %635 = vmatpush1.msra.mxu0 %v391
        %636 = vmatprep.subr.mxu0 0.0
        %637 = vmatpush1.msra.mxu0 %v392
        %638 = vmatprep.subr.mxu0 0.0
        %639 = vmatpush1.msra.mxu0 0.0
        %640 = vmatprep.subr.mxu0 0.0
        %641 = vmatpush1.msra.mxu0 0.0
        %642 = vmatprep.subr.mxu0 0.0
        %643 = vmatpush1.msra.mxu0 0.0
        %644 = vmatprep.subr.mxu0 0.0
        %645 = vmatpush1.msra.mxu0 0.0
        %646 = vmatprep.subr.mxu0 0.0
        %647 = vmatpush1.msra.mxu0 0.0
        %648 = vmatprep.subr.mxu0 0.0
        %649 = vmatpush1.msra.mxu0 0.0
        %650 = vmatprep.subr.mxu0 0.0
        %651 = vmatpush1.msra.mxu0 0.0
        %652 = vmatprep.subr.mxu0 0.0
        %653 = vmatpush1.msra.mxu0 0.0
        %654 = vmatprep.subr.mxu0 0.0
        %655 = vmatpush1.msra.mxu0 0.0
        %656 = vmatprep.subr.mxu0 0.0
        %657 = vmatpush1.msra.mxu0 0.0
        %658 = vmatprep.subr.mxu0 0.0
        %659 = vmatpush1.msra.mxu0 0.0
        %660 = vmatprep.subr.mxu0 0.0
        %661 = vmatpush1.msra.mxu0 0.0
        %662 = vmatprep.subr.mxu0 0.0
        %663 = vmatpush1.msra.mxu0 0.0
        %664 = vmatprep.subr.mxu0 0.0
        %665 = vmatpush1.msra.mxu0 0.0
        %666 = vmatprep.subr.mxu0 0.0
        %667 = vmatpush1.msra.mxu0 0.0
        %668 = vmatprep.subr.mxu0 0.0
        %669 = vmatpush1.msra.mxu0 0.0
        %670 = vmatprep.mubr.f32.mxu0 0.0
        %671 = vmatmul.mubr.f32.gmra.mrb[0].mxu0 %v604
        %v672 = vpop.f32.mrb[0].mxu0
        %v673 = vadd.f32 0.0, %v672
        %v674 = vpop.f32.mrb[0].mxu0
        %675 = vdwg.mxu0
        %v676 = vld [vmem:[%s4] sm:$0xff]
        %v677 = vld [vmem:[%s4 + $0x8] sm:$0xff]
        %v678 = vld [vmem:[%s4 + $0x10] sm:$0xff]
        %v679 = vld [vmem:[%s4 + $0x18] sm:$0xff]
        %s680 = scalar_lea.vmem %s3, 32
        %v681 = vld [vmem:[%s680] sm:$0xff]
        %v682 = vld [vmem:[%s680 + $0x8] sm:$0xff]
        %v683 = vld [vmem:[%s680 + $0x10] sm:$0xff]
        %v684 = vld [vmem:[%s680 + $0x18] sm:$0xff]
        %685 = vmatprep.subr.mxu0 0.0
        %686 = vmatpush1.msra.mxu0 %v681
        %687 = vmatprep.subr.mxu0 0.0
        %688 = vmatpush1.msra.mxu0 %v682
        %689 = vmatprep.subr.mxu0 0.0
        %690 = vmatpush1.msra.mxu0 %v683
        %691 = vmatprep.subr.mxu0 0.0
        %692 = vmatpush1.msra.mxu0 %v684
        %693 = vmatprep.subr.mxu0 0.0
        %694 = vmatpush1.msra.mxu0 0.0
        %695 = vmatprep.subr.mxu0 0.0
        %696 = vmatpush1.msra.mxu0 0.0
        %697 = vmatprep.subr.mxu0 0.0
        %698 = vmatpush1.msra.mxu0 0.0
        %699 = vmatprep.subr.mxu0 0.0
        %700 = vmatpush1.msra.mxu0 0.0
        %701 = vmatprep.subr.mxu0 0.0
        %702 = vmatpush1.msra.mxu0 0.0
        %703 = vmatprep.subr.mxu0 0.0
        %704 = vmatpush1.msra.mxu0 0.0
        %705 = vmatprep.subr.mxu0 0.0
        %706 = vmatpush1.msra.mxu0 0.0
        %707 = vmatprep.subr.mxu0 0.0
        %708 = vmatpush1.msra.mxu0 0.0
        %709 = vmatprep.subr.mxu0 0.0
        %710 = vmatpush1.msra.mxu0 0.0
        %711 = vmatprep.subr.mxu0 0.0
        %712 = vmatpush1.msra.mxu0 0.0
        %713 = vmatprep.subr.mxu0 0.0
        %714 = vmatpush1.msra.mxu0 0.0
        %715 = vmatprep.subr.mxu0 0.0
        %716 = vmatpush1.msra.mxu0 0.0
        %717 = vmatprep.subr.mxu0 0.0
        %718 = vmatpush1.msra.mxu0 0.0
        %719 = vmatprep.subr.mxu0 0.0
        %720 = vmatpush1.msra.mxu0 0.0
        %721 = vmatprep.subr.mxu0 0.0
        %722 = vmatpush1.msra.mxu0 0.0
        %723 = vmatprep.subr.mxu0 0.0
        %724 = vmatpush1.msra.mxu0 0.0
        %725 = vmatprep.subr.mxu0 0.0
        %726 = vmatpush1.msra.mxu0 0.0
        %727 = vmatprep.subr.mxu0 0.0
        %728 = vmatpush1.msra.mxu0 0.0
        %729 = vmatprep.subr.mxu0 0.0
        %730 = vmatpush1.msra.mxu0 0.0
        %731 = vmatprep.subr.mxu0 0.0
        %732 = vmatpush1.msra.mxu0 0.0
        %733 = vmatprep.subr.mxu0 0.0
        %734 = vmatpush1.msra.mxu0 0.0
        %735 = vmatprep.subr.mxu0 0.0
        %736 = vmatpush1.msra.mxu0 0.0
        %737 = vmatprep.subr.mxu0 0.0
        %738 = vmatpush1.msra.mxu0 0.0
        %739 = vmatprep.subr.mxu0 0.0
        %740 = vmatpush1.msra.mxu0 0.0
        %741 = vmatprep.subr.mxu0 0.0
        %742 = vmatpush1.msra.mxu0 0.0
        %743 = vmatprep.subr.mxu0 0.0
        %744 = vmatpush1.msra.mxu0 0.0
        %745 = vmatprep.subr.mxu0 0.0
        %746 = vmatpush1.msra.mxu0 0.0
        %747 = vmatprep.subr.mxu0 0.0
        %748 = vmatpush1.msra.mxu0 0.0
        %749 = vmatprep.mubr.f32.mxu0 0.0
        %750 = vmatmul.mubr.f32.gmra.mrb[0].mxu0 %v403
        %v751 = vpop.f32.mrb[0].mxu0
        %v752 = vadd.f32 0.0, %v751
        %v753 = vpop.f32.mrb[0].mxu0
        %754 = vdwg.mxu0
        %v756 = vsel %vm401, %v752, 0
        %758 = vmatprep.subr.mxu0 0.0
        %759 = vmatpush1.xpose.msra.mxu0 %v479
        %760 = vmatprep.subr.mxu0 0.0
        %761 = vmatpush1.xpose.msra.mxu0 %v482
        %762 = vmatprep.subr.mxu0 0.0
        %763 = vmatpush1.xpose.msra.mxu0 %v485
        %764 = vmatprep.subr.mxu0 0.0
        %765 = vmatpush1.xpose.msra.mxu0 %v488
        %766 = vmatprep.subr.mxu0 0.0
        %767 = vmatpush1.xpose.msra.mxu0 %v491
        %768 = vmatprep.subr.mxu0 0.0
        %769 = vmatpush1.xpose.msra.mxu0 %v494
        %770 = vmatprep.subr.mxu0 0.0
        %771 = vmatpush1.xpose.msra.mxu0 %v497
        %772 = vmatprep.subr.mxu0 0.0
        %773 = vmatpush1.xpose.msra.mxu0 %v500
        %774 = vmatprep.subr.mxu0 0.0
        %775 = vmatpush1.xpose.msra.mxu0 %v503
        %776 = vmatprep.subr.mxu0 0.0
        %777 = vmatpush1.xpose.msra.mxu0 %v506
        %778 = vmatprep.subr.mxu0 0.0
        %779 = vmatpush1.xpose.msra.mxu0 %v509
        %780 = vmatprep.subr.mxu0 0.0
        %781 = vmatpush1.xpose.msra.mxu0 %v512
        %782 = vmatprep.subr.mxu0 0.0
        %783 = vmatpush1.xpose.msra.mxu0 %v515
        %784 = vmatprep.subr.mxu0 0.0
        %785 = vmatpush1.xpose.msra.mxu0 %v518
        %786 = vmatprep.subr.mxu0 0.0
        %787 = vmatpush1.xpose.msra.mxu0 %v521
        %788 = vmatprep.subr.mxu0 0.0
        %789 = vmatpush1.xpose.msra.mxu0 %v524
        %790 = vmatprep.subr.mxu0 0.0
        %791 = vmatpush1.xpose.msra.mxu0 0.0
        %792 = vmatprep.subr.mxu0 0.0
        %793 = vmatpush1.xpose.msra.mxu0 0.0
        %794 = vmatprep.subr.mxu0 0.0
        %795 = vmatpush1.xpose.msra.mxu0 0.0
        %796 = vmatprep.subr.mxu0 0.0
        %797 = vmatpush1.xpose.msra.mxu0 0.0
        %798 = vmatprep.subr.mxu0 0.0
        %799 = vmatpush1.xpose.msra.mxu0 0.0
        %800 = vmatprep.subr.mxu0 0.0
        %801 = vmatpush1.xpose.msra.mxu0 0.0
        %802 = vmatprep.subr.mxu0 0.0
        %803 = vmatpush1.xpose.msra.mxu0 0.0
        %804 = vmatprep.subr.mxu0 0.0
        %805 = vmatpush1.xpose.msra.mxu0 0.0
        %806 = vmatprep.subr.mxu0 0.0
        %807 = vmatpush1.xpose.msra.mxu0 0.0
        %808 = vmatprep.subr.mxu0 0.0
        %809 = vmatpush1.xpose.msra.mxu0 0.0
        %810 = vmatprep.subr.mxu0 0.0
        %811 = vmatpush1.xpose.msra.mxu0 0.0
        %812 = vmatprep.subr.mxu0 0.0
        %813 = vmatpush1.xpose.msra.mxu0 0.0
        %814 = vmatprep.subr.mxu0 0.0
        %815 = vmatpush1.xpose.msra.mxu0 0.0
        %816 = vmatprep.subr.mxu0 0.0
        %817 = vmatpush1.xpose.msra.mxu0 0.0
        %818 = vmatprep.subr.mxu0 0.0
        %819 = vmatpush1.xpose.msra.mxu0 0.0
        %820 = vmatprep.subr.mxu0 0.0
        %821 = vmatpush1.xpose.msra.mxu0 0.0
        %822 = vmatprep.mubr.f32.mxu0 0.0
        %823 = vmatmul.mubr.f32.gmra.mrb[0].mxu0 %v756
        %v824 = vpop.f32.mrb[0].mxu0
        %v825 = vadd.f32 %v396, %v824
        %v826 = vpop.f32.mrb[0].mxu0
        %827 = vdwg.mxu0
        %828 = vmax.xlane.f32.xlu0 %v825
        %v829 = vpop.xlane.xlu0 %828
        %v830 = vsub.f32 %v825, %v829
        %v831 = vmul.f32 %v830, 1.442695
        %v832 = vpow.pop %v831
        %833 = vadd.xlane.f32.xlu0 %v832
        %v834 = vpop.xlane.xlu0 %833
        %v835 = vrcp.pop %v834
        %v836 = vmul.f32 %v832, %v835
        %v837 = vadd.f32 %v605, %v836
        %838 = vmatprep.subr.mxu0 0.0
        %839 = vmatpush1.msra.mxu0 %v377
        %840 = vmatprep.subr.mxu0 0.0
        %841 = vmatpush1.msra.mxu0 %v378
        %842 = vmatprep.subr.mxu0 0.0
        %843 = vmatpush1.msra.mxu0 %v379
        %844 = vmatprep.subr.mxu0 0.0
        %845 = vmatpush1.msra.mxu0 %v380
        %846 = vmatprep.subr.mxu0 0.0
        %847 = vmatpush1.msra.mxu0 %v381
        %848 = vmatprep.subr.mxu0 0.0
        %849 = vmatpush1.msra.mxu0 %v382
        %850 = vmatprep.subr.mxu0 0.0
        %851 = vmatpush1.msra.mxu0 %v383
        %852 = vmatprep.subr.mxu0 0.0
        %853 = vmatpush1.msra.mxu0 %v384
        %854 = vmatprep.subr.mxu0 0.0
        %855 = vmatpush1.msra.mxu0 %v385
        %856 = vmatprep.subr.mxu0 0.0
        %857 = vmatpush1.msra.mxu0 %v386
        %858 = vmatprep.subr.mxu0 0.0
        %859 = vmatpush1.msra.mxu0 %v387
        %860 = vmatprep.subr.mxu0 0.0
        %861 = vmatpush1.msra.mxu0 %v388
        %862 = vmatprep.subr.mxu0 0.0
        %863 = vmatpush1.msra.mxu0 %v389
        %864 = vmatprep.subr.mxu0 0.0
        %865 = vmatpush1.msra.mxu0 %v390
        %866 = vmatprep.subr.mxu0 0.0
        %867 = vmatpush1.msra.mxu0 %v391
        %868 = vmatprep.subr.mxu0 0.0
        %869 = vmatpush1.msra.mxu0 %v392
        %870 = vmatprep.subr.mxu0 0.0
        %871 = vmatpush1.msra.mxu0 0.0
        %872 = vmatprep.subr.mxu0 0.0
        %873 = vmatpush1.msra.mxu0 0.0
        %874 = vmatprep.subr.mxu0 0.0
        %875 = vmatpush1.msra.mxu0 0.0
        %876 = vmatprep.subr.mxu0 0.0
        %877 = vmatpush1.msra.mxu0 0.0
        %878 = vmatprep.subr.mxu0 0.0
        %879 = vmatpush1.msra.mxu0 0.0
        %880 = vmatprep.subr.mxu0 0.0
        %881 = vmatpush1.msra.mxu0 0.0
        %882 = vmatprep.subr.mxu0 0.0
        %883 = vmatpush1.msra.mxu0 0.0
        %884 = vmatprep.subr.mxu0 0.0
        %885 = vmatpush1.msra.mxu0 0.0
        %886 = vmatprep.subr.mxu0 0.0
        %887 = vmatpush1.msra.mxu0 0.0
        %888 = vmatprep.subr.mxu0 0.0
        %889 = vmatpush1.msra.mxu0 0.0
        %890 = vmatprep.subr.mxu0 0.0
        %891 = vmatpush1.msra.mxu0 0.0
        %892 = vmatprep.subr.mxu0 0.0
        %893 = vmatpush1.msra.mxu0 0.0
        %894 = vmatprep.subr.mxu0 0.0
        %895 = vmatpush1.msra.mxu0 0.0
        %896 = vmatprep.subr.mxu0 0.0
        %897 = vmatpush1.msra.mxu0 0.0
        %898 = vmatprep.subr.mxu0 0.0
        %899 = vmatpush1.msra.mxu0 0.0
        %900 = vmatprep.subr.mxu0 0.0
        %901 = vmatpush1.msra.mxu0 0.0
        %902 = vmatprep.mubr.f32.mxu0 0.0
        %903 = vmatmul.mubr.f32.gmra.mrb[0].mxu0 %v836
        %v904 = vpop.f32.mrb[0].mxu0
        %v905 = vadd.f32 0.0, %v904
        %v906 = vpop.f32.mrb[0].mxu0
        %907 = vdwg.mxu0
        %s908 = scalar_lea.vmem %s4, 32
        %v909 = vld [vmem:[%s908] sm:$0xff]
        %v910 = vld [vmem:[%s908 + $0x8] sm:$0xff]
        %v911 = vld [vmem:[%s908 + $0x10] sm:$0xff]
        %v912 = vld [vmem:[%s908 + $0x18] sm:$0xff]
        %v914 = vsel %vm401, %v905, 0
        %916 = vmatprep.subr.mxu0 0.0
        %917 = vmatpush1.msra.mxu0 %v909
        %918 = vmatprep.subr.mxu0 0.0
        %919 = vmatpush1.msra.mxu0 %v910
        %920 = vmatprep.subr.mxu0 0.0
        %921 = vmatpush1.msra.mxu0 %v911
        %922 = vmatprep.subr.mxu0 0.0
        %923 = vmatpush1.msra.mxu0 %v912
        %924 = vmatprep.subr.mxu0 0.0
        %925 = vmatpush1.msra.mxu0 0.0
        %926 = vmatprep.subr.mxu0 0.0
        %927 = vmatpush1.msra.mxu0 0.0
        %928 = vmatprep.subr.mxu0 0.0
        %929 = vmatpush1.msra.mxu0 0.0
        %930 = vmatprep.subr.mxu0 0.0
        %931 = vmatpush1.msra.mxu0 0.0
        %932 = vmatprep.subr.mxu0 0.0
        %933 = vmatpush1.msra.mxu0 0.0
        %934 = vmatprep.subr.mxu0 0.0
        %935 = vmatpush1.msra.mxu0 0.0
        %936 = vmatprep.subr.mxu0 0.0
        %937 = vmatpush1.msra.mxu0 0.0
        %938 = vmatprep.subr.mxu0 0.0
        %939 = vmatpush1.msra.mxu0 0.0
        %940 = vmatprep.subr.mxu0 0.0
        %941 = vmatpush1.msra.mxu0 0.0
        %942 = vmatprep.subr.mxu0 0.0
        %943 = vmatpush1.msra.mxu0 0.0
        %944 = vmatprep.subr.mxu0 0.0
        %945 = vmatpush1.msra.mxu0 0.0
        %946 = vmatprep.subr.mxu0 0.0
        %947 = vmatpush1.msra.mxu0 0.0
        %948 = vmatprep.subr.mxu0 0.0
        %949 = vmatpush1.msra.mxu0 0.0
        %950 = vmatprep.subr.mxu0 0.0
        %951 = vmatpush1.msra.mxu0 0.0
        %952 = vmatprep.subr.mxu0 0.0
        %953 = vmatpush1.msra.mxu0 0.0
        %954 = vmatprep.subr.mxu0 0.0
        %955 = vmatpush1.msra.mxu0 0.0
        %956 = vmatprep.subr.mxu0 0.0
        %957 = vmatpush1.msra.mxu0 0.0
        %958 = vmatprep.subr.mxu0 0.0
        %959 = vmatpush1.msra.mxu0 0.0
        %960 = vmatprep.subr.mxu0 0.0
        %961 = vmatpush1.msra.mxu0 0.0
        %962 = vmatprep.subr.mxu0 0.0
        %963 = vmatpush1.msra.mxu0 0.0
        %964 = vmatprep.subr.mxu0 0.0
        %965 = vmatpush1.msra.mxu0 0.0
        %966 = vmatprep.subr.mxu0 0.0
        %967 = vmatpush1.msra.mxu0 0.0
        %968 = vmatprep.subr.mxu0 0.0
        %969 = vmatpush1.msra.mxu0 0.0
        %970 = vmatprep.subr.mxu0 0.0
        %971 = vmatpush1.msra.mxu0 0.0
        %972 = vmatprep.subr.mxu0 0.0
        %973 = vmatpush1.msra.mxu0 0.0
        %974 = vmatprep.subr.mxu0 0.0
        %975 = vmatpush1.msra.mxu0 0.0
        %976 = vmatprep.subr.mxu0 0.0
        %977 = vmatpush1.msra.mxu0 0.0
        %978 = vmatprep.subr.mxu0 0.0
        %979 = vmatpush1.msra.mxu0 0.0
        %980 = vmatprep.mubr.f32.mxu0 0.0
        %981 = vmatmul.mubr.f32.gmra.mrb[0].mxu0 %v914
        %v982 = vpop.f32.mrb[0].mxu0
        %v983 = vadd.f32 0.0, %v982
        %v984 = vpop.f32.mrb[0].mxu0
        %985 = vdwg.mxu0
        %v987 = vsel %vm401, %v673, 0
        %989 = vmatprep.subr.mxu0 0.0
        %990 = vmatpush1.msra.mxu0 %v676
        %991 = vmatprep.subr.mxu0 0.0
        %992 = vmatpush1.msra.mxu0 %v677
        %993 = vmatprep.subr.mxu0 0.0
        %994 = vmatpush1.msra.mxu0 %v678
        %995 = vmatprep.subr.mxu0 0.0
        %996 = vmatpush1.msra.mxu0 %v679
        %997 = vmatprep.subr.mxu0 0.0
        %998 = vmatpush1.msra.mxu0 0.0
        %999 = vmatprep.subr.mxu0 0.0
        %1000 = vmatpush1.msra.mxu0 0.0
        %1001 = vmatprep.subr.mxu0 0.0
        %1002 = vmatpush1.msra.mxu0 0.0
        %1003 = vmatprep.subr.mxu0 0.0
        %1004 = vmatpush1.msra.mxu0 0.0
        %1005 = vmatprep.subr.mxu0 0.0
        %1006 = vmatpush1.msra.mxu0 0.0
        %1007 = vmatprep.subr.mxu0 0.0
        %1008 = vmatpush1.msra.mxu0 0.0
        %1009 = vmatprep.subr.mxu0 0.0
        %1010 = vmatpush1.msra.mxu0 0.0
        %1011 = vmatprep.subr.mxu0 0.0
        %1012 = vmatpush1.msra.mxu0 0.0
        %1013 = vmatprep.subr.mxu0 0.0
        %1014 = vmatpush1.msra.mxu0 0.0
        %1015 = vmatprep.subr.mxu0 0.0
        %1016 = vmatpush1.msra.mxu0 0.0
        %1017 = vmatprep.subr.mxu0 0.0
        %1018 = vmatpush1.msra.mxu0 0.0
        %1019 = vmatprep.subr.mxu0 0.0
        %1020 = vmatpush1.msra.mxu0 0.0
        %1021 = vmatprep.subr.mxu0 0.0
        %1022 = vmatpush1.msra.mxu0 0.0
        %1023 = vmatprep.subr.mxu0 0.0
        %1024 = vmatpush1.msra.mxu0 0.0
        %1025 = vmatprep.subr.mxu0 0.0
        %1026 = vmatpush1.msra.mxu0 0.0
        %1027 = vmatprep.subr.mxu0 0.0
        %1028 = vmatpush1.msra.mxu0 0.0
        %1029 = vmatprep.subr.mxu0 0.0
        %1030 = vmatpush1.msra.mxu0 0.0
        %1031 = vmatprep.subr.mxu0 0.0
        %1032 = vmatpush1.msra.mxu0 0.0
        %1033 = vmatprep.subr.mxu0 0.0
        %1034 = vmatpush1.msra.mxu0 0.0
        %1035 = vmatprep.subr.mxu0 0.0
        %1036 = vmatpush1.msra.mxu0 0.0
        %1037 = vmatprep.subr.mxu0 0.0
        %1038 = vmatpush1.msra.mxu0 0.0
        %1039 = vmatprep.subr.mxu0 0.0
        %1040 = vmatpush1.msra.mxu0 0.0
        %1041 = vmatprep.subr.mxu0 0.0
        %1042 = vmatpush1.msra.mxu0 0.0
        %1043 = vmatprep.subr.mxu0 0.0
        %1044 = vmatpush1.msra.mxu0 0.0
        %1045 = vmatprep.subr.mxu0 0.0
        %1046 = vmatpush1.msra.mxu0 0.0
        %1047 = vmatprep.subr.mxu0 0.0
        %1048 = vmatpush1.msra.mxu0 0.0
        %1049 = vmatprep.subr.mxu0 0.0
        %1050 = vmatpush1.msra.mxu0 0.0
        %1051 = vmatprep.subr.mxu0 0.0
        %1052 = vmatpush1.msra.mxu0 0.0
        %1053 = vmatprep.mubr.f32.mxu0 0.0
        %1054 = vmatmul.mubr.f32.gmra.mrb[0].mxu0 %v987
        %v1055 = vpop.f32.mrb[0].mxu0
        %v1056 = vadd.f32 %v983, %v1055
        %v1057 = vpop.f32.mrb[0].mxu0
        %1058 = vdwg.mxu0
        %v1059 = vld [vmem:[%s5] sm:$0x1]
        %v1061 = vlaneseq
        %v1062 = vshrl.u32 %v1061, 7
        %v1063 = vsub.s32 0, %v1062
        %v1064 = vrot.slane %v1059, %v1063
        %v1066 = vadd.f32 %v1056, %v1064
        %v1067 = vmax.f32 %v1066, 0.0
        %v1068 = vsel %vm401, %v1067, 0.0
        %1069 = vadd.xlane.f32.xlu0 %v1068
        %v1070 = vpop.xlane.xlu0 %1069
        %v1071 = vrcp.pop 32.0
        %v1072 = vmul.f32 %v1070, %v1071
        %v1073 = vsub.f32 %v1067, %v1072
        %v1074 = vmul.f32 %v1073, %v1073
        %v1075 = vsel %vm401, %v1074, 0.0
        %1076 = vadd.xlane.f32.xlu0 %v1075
        %v1077 = vpop.xlane.xlu0 %1076
        %v1078 = vmul.f32 %v1077, %v1071
        %v1079 = vadd.f32 %v1078, 1e-06
        %v1080 = vrsqrt.pop %v1079
        %v1081 = vmul.f32 %v1073, %v1080
        %v1082 = vld [vmem:[%s6] sm:$0x1]
        %v1084 = vlaneseq
        %v1085 = vshrl.u32 %v1084, 7
        %v1086 = vsub.s32 0, %v1085
        %v1087 = vrot.slane %v1082, %v1086
        %v1089 = vmul.f32 %v1081, %v1087
        %v1090 = vld [vmem:[%s7] sm:$0x1]
        %v1092 = vlaneseq
        %v1093 = vshrl.u32 %v1092, 7
        %v1094 = vsub.s32 0, %v1093
        %v1095 = vrot.slane %v1090, %v1094
        %v1097 = vadd.f32 %v1089, %v1095
        %1098 = vst.msk [vmem:[%s355] sm:$0xff] %vm401, %v1097
        %1099 = vst [vmem:[%s362] sm:$0xff] %v837
        %s1100 = sand.u32 %s218, 1
        %s1101 = scalar_lea.sflag [#allocation3], %s1100
        %s1102 = sand.u32 %s218, 1
        %s1103 = smul.addr %s1102, 8
        %s1104 = scalar_lea.vmem [#allocation2], %s1103
        %s1105 = sand.u32 %s244, 1
        %s1106 = scalar_lea.sflag [#allocation5], %s1105
        %s1107 = sand.u32 %s244, 1
        %s1108 = smul.addr %s1107, 8
        %s1109 = scalar_lea.vmem [#allocation4], %s1108
        // Predicated region
        $region53: #{tpu_custom_call.1} parent=51 // pred_check
          %p1110 = pneg %p228
        $region54: #{tpu_custom_call.1} parent=51 // pred_check_branch
          %1112 = sbr.rel (%p1110) target = $region56
        $region55: #{tpu_custom_call.1} parent=51 // pred_region
          %s1114 = ssub.s32 128, 128
          %1115 = vsyncadd %s1101, %s1114
          %s1116 = smul.addr %s27, 128
          %s1117 = scalar_lea.hbm %s8, %s1116
          %s1119 = sshll.u32 %s1104, 4
          %s1120 = int_to_ptr.vmem [resolvable:$true] %s1119
          %1122 = dma.vmem_to_hbm [thread:$0]  %s1120, 128, %s1117, %s1101
        $region56: #{tpu_custom_call.1} parent=51 // pred_fallthru
          _
        // Predicated region
        $region57: #{tpu_custom_call.1} parent=51 // pred_check
          %p1123 = pneg %p254
        $region58: #{tpu_custom_call.1} parent=51 // pred_check_branch
          %1125 = sbr.rel (%p1123) target = $region60
        $region59: #{tpu_custom_call.1} parent=51 // pred_region
          %s1127 = ssub.s32 128, 128
          %1128 = vsyncadd %s1106, %s1127
          %s1129 = smul.addr %s27, 128
          %s1130 = scalar_lea.hbm %s9, %s1129
          %s1132 = sshll.u32 %s1109, 4
          %s1133 = int_to_ptr.vmem [resolvable:$true] %s1132
          %1135 = dma.vmem_to_hbm [thread:$0]  %s1133, 128, %s1130, %s1106
        $region60: #{tpu_custom_call.1} parent=51 // pred_fallthru
          _
      $region52: #{tpu_custom_call.1} parent=5 // pred_fallthru
        _
      %p1136 = scmp.le.s32.totalorder 2, %s22
      // Predicated region
      $region61: #{tpu_custom_call.1} parent=5 // pred_check
        %p1137 = pneg %p1136
      $region62: #{tpu_custom_call.1} parent=5 // pred_check_branch
        %1139 = sbr.rel (%p1137) target = $region64
      $region63: #{tpu_custom_call.1} parent=5 // pred_region
        %s1140 = ssub.s32 %s22, 2
        // Predicated region
        $region65: #{tpu_custom_call.1} parent=63 // pred_check
          %p1141 = pneg %p234
        $region66: #{tpu_custom_call.1} parent=63 // pred_check_branch
          %1143 = sbr.rel (%p1141) target = $region68
        $region67: #{tpu_custom_call.1} parent=63 // pred_region
          %s1144 = sand.u32 %s219, 1
          %s1145 = scalar_lea.sflag [#allocation3], %s1144
          %s1146 = sand.u32 %s219, 1
          %s1147 = smul.addr %s1146, 8
          %s1148 = scalar_lea.vmem [#allocation2], %s1147
          %1149 = dma.done %s1145, 128
        $region68: #{tpu_custom_call.1} parent=63 // pred_fallthru
          _
        // Predicated region
        $region69: #{tpu_custom_call.1} parent=63 // pred_check
          %p1150 = pneg %p260
        $region70: #{tpu_custom_call.1} parent=63 // pred_check_branch
          %1152 = sbr.rel (%p1150) target = $region72
        $region71: #{tpu_custom_call.1} parent=63 // pred_region
          %s1153 = sand.u32 %s245, 1
          %s1154 = scalar_lea.sflag [#allocation5], %s1153
          %s1155 = sand.u32 %s245, 1
          %s1156 = smul.addr %s1155, 8
          %s1157 = scalar_lea.vmem [#allocation4], %s1156
          %1158 = dma.done %s1154, 128
        $region72: #{tpu_custom_call.1} parent=63 // pred_fallthru
          _
      $region64: #{tpu_custom_call.1} parent=5 // pred_fallthru
        _
    $region6: #{tpu_custom_call.1} parent=1 // loop_footer
      %s26 = sadd.s32 1, %s22
    $region7: #{tpu_custom_call.1} parent=1 // loop_footer_branch
      %21 = sbr.rel target = $region3
    $region8: #{tpu_custom_call.1} parent=1 // loop_exit
      _
    %1159 = vsyncpa [#allocation3], 1
    %s1160 = scalar_lea.sflag [#allocation3], 1
    %1161 = vsyncpa %s1160, 1
    %1162 = vsyncpa [#allocation5], 1
    %s1163 = scalar_lea.sflag [#allocation5], 1
    %1164 = vsyncpa %s1163, 1

</llo_original>
